<compile_context>
chip_gen: v5e
topology: v5e:2x2
jax: 0.10.0
libtpu: 0.0.40
codegen_flags: <defaults>
</compile_context>

<pallas_src>
import jax
import jax.numpy as jnp
from jax.experimental import pallas as pl
from jax.experimental.pallas import tpu as pltpu


def _dice_kernel(pred_ref, tgt_ref, inter_out_ref, denom_out_ref,
                 inter_acc, denom_acc):
    # grid = (row_block_idx, col_split_idx, col_step_idx); axis 2 is the
    # reduction axis (kept last, "arbitrary"); axes 0/1 are "parallel".
    j = pl.program_id(2)

    @pl.when(j == 0)
    def _():
        inter_acc[...] = jnp.zeros_like(inter_acc)
        denom_acc[...] = jnp.zeros_like(denom_acc)

    p = pred_ref[...].astype(jnp.float32)
    t = tgt_ref[...].astype(jnp.float32)

    inter_acc[...] += jnp.sum(p * t, axis=1, keepdims=True)
    # merged psum + tsum accumulator (denominator only ever uses the sum)
    denom_acc[...] += jnp.sum(p + t, axis=1, keepdims=True)

    @pl.when(j == pl.num_programs(2) - 1)
    def _():
        inter_out_ref[...] = inter_acc[...].reshape(inter_out_ref.shape)
        denom_out_ref[...] = denom_acc[...].reshape(denom_out_ref.shape)


def _ceil_to(x, m):
    return ((x + m - 1) // m) * m


def _sublane_multiple(itemsize):
    # f32 -> 8, bf16/f16 -> 16, int8/fp8 -> 32
    return 8 * max(1, 4 // itemsize)


def dice_loss(pred, target, smooth=1.0, *, col_block=None, vmem_cap_bytes=None):
    """pred, target: (N, C, H, W) arrays (any float/int dtype). Scalar f32 loss."""
    assert pred.shape == target.shape
    n, c, h, w = pred.shape
    rows = n * c
    cols = h * w

    pred2 = pred.reshape(rows, cols)
    tgt2 = target.reshape(rows, cols)

    isz_p = jnp.dtype(pred2.dtype).itemsize
    isz_t = jnp.dtype(tgt2.dtype).itemsize
    rg = max(_sublane_multiple(isz_p), _sublane_multiple(isz_t))

    # --- row tiling: row_block multiple of the sublane granularity, <= 512 ---
    rows_pad = _ceil_to(rows, rg)
    max_rb = 512
    if rows_pad <= max_rb:
        row_block = rows_pad
    else:
        row_block = rg
        for cand in range(rg, max_rb + 1, rg):
            if rows_pad % cand == 0:
                row_block = cand
    n_row_blocks = rows_pad // row_block

    # --- VMEM-budgeted column tile (generation-aware) ---
    if vmem_cap_bytes is None:
        try:
            vmem_cap_bytes = int(pltpu.get_tpu_info().vmem_capacity_bytes)
        except Exception:
            vmem_cap_bytes = 64 << 20  # conservative (v7x has 64 MiB / core)
    if col_block is None:
        tile_budget = vmem_cap_bytes // 2          # headroom for scratch etc.
        bytes_per_col = 2 * row_block * (isz_p + isz_t)  # 2 pipeline bufs/input
        cb = max(128, (tile_budget // bytes_per_col) // 128 * 128)
        cb = min(cb, 32768)                        # keep per-step DMA a few MiB
    else:
        cb = max(128, _ceil_to(col_block, 128))
    cb = min(cb, _ceil_to(cols, 128))

    # --- optional column split so v7x megacore has work when rows are few ---
    ncs = 2 if (n_row_blocks == 1 and _ceil_to(cols, cb) // cb >= 2) else 1
    cols_pad = _ceil_to(cols, ncs * cb)
    n_col_steps = cols_pad // (ncs * cb)

    # zero padding is exact for dice: contributes 0 to every sum
    if rows_pad != rows or cols_pad != cols:
        pred2 = jnp.pad(pred2, ((0, rows_pad - rows), (0, cols_pad - cols)))
        tgt2 = jnp.pad(tgt2, ((0, rows_pad - rows), (0, cols_pad - cols)))

    grid = (n_row_blocks, ncs, n_col_steps)

    needed = 2 * row_block * cb * (isz_p + isz_t) + (2 << 20)
    vmem_limit = int(min(vmem_cap_bytes * 7 // 8, max(needed, 32 << 20)))

    in_idx = lambda i, s, j: (i, s * n_col_steps + j)
    out_idx = lambda i, s, j: (s, i, 0)

    inter_p, denom_p = pl.pallas_call(
        _dice_kernel,
        out_shape=(
            jax.ShapeDtypeStruct((ncs, rows_pad, 1), jnp.float32),
            jax.ShapeDtypeStruct((ncs, rows_pad, 1), jnp.float32),
        ),
        grid_spec=pltpu.PrefetchScalarGridSpec(
            num_scalar_prefetch=0,
            grid=grid,
            in_specs=[
                pl.BlockSpec((row_block, cb), in_idx),
                pl.BlockSpec((row_block, cb), in_idx),
            ],
            out_specs=[
                pl.BlockSpec((1, row_block, 1), out_idx),
                pl.BlockSpec((1, row_block, 1), out_idx),
            ],
            scratch_shapes=[
                pltpu.VMEM((row_block, 1), jnp.float32),
                pltpu.VMEM((row_block, 1), jnp.float32),
            ],
        ),
        compiler_params=pltpu.CompilerParams(
            dimension_semantics=("parallel", "parallel", "arbitrary"),
            vmem_limit_bytes=vmem_limit,
        ),
    )(pred2, tgt2)

    # tiny finalize in the wrapper (O(rows) work): dice per row, then mean
    inter = jnp.sum(inter_p, axis=0)[:rows, 0]
    denom = jnp.sum(denom_p, axis=0)[:rows, 0]
    dice = 1.0 - (2.0 * inter + smooth) / (denom + smooth)
    return jnp.mean(dice)


def dice_loss_ref(pred, target, smooth=1.0):
    inter = (pred * target).sum(axis=2).sum(axis=2)
    loss = 1.0 - (2.0 * inter + smooth) / (
        pred.sum(axis=2).sum(axis=2) + target.sum(axis=2).sum(axis=2) + smooth)
    return loss.mean()


if __name__ == "__main__":
    key = jax.random.PRNGKey(0)
    k1, k2 = jax.random.split(key)
    N, C, H, W = 2, 4, 16, 16
    # pred ~ sigmoid-like probabilities, target ~ binary mask
    pred = jax.nn.sigmoid(jax.random.normal(k1, (N, C, H, W), jnp.float32))
    target = (jax.random.uniform(k2, (N, C, H, W), jnp.float32) > 0.5).astype(
        jnp.float32)

    ref = dice_loss_ref(pred, target, smooth=1.0)

    # 1) f32 / f32 path
    out = jax.block_until_ready(dice_loss(pred, target, smooth=1.0))
    assert jnp.allclose(out, ref, rtol=1e-5, atol=1e-6), (out, ref)

    # 2) bandwidth-optimized path: binary target passed as bf16 ({0,1} exact),
    #    halving the target's HBM traffic; kernel still accumulates in f32.
    out_bf16 = jax.block_until_ready(
        dice_loss(pred, target.astype(jnp.bfloat16), smooth=1.0))
    assert jnp.allclose(out_bf16, ref, rtol=1e-5, atol=1e-6), (out_bf16, ref)

    print("KERNEL_OK")
</pallas_src>

<mosaic_0001>
module attributes {stable_mosaic.version = 11 : i64} {
  func.func @_dice_kernel(%arg0: i32, %arg1: i32, %arg2: i32, %arg3: memref<8x256xf32, #tpu.memory_space<vmem>>, %arg4: memref<8x256xf32, #tpu.memory_space<vmem>>, %arg5: memref<1x8x1xf32, #tpu.memory_space<vmem>>, %arg6: memref<1x8x1xf32, #tpu.memory_space<vmem>>, %arg7: memref<8x1xf32, #tpu.memory_space<vmem>>, %arg8: memref<8x1xf32, #tpu.memory_space<vmem>>) attributes {dimension_semantics = [#tpu.dimension_semantics<parallel>, #tpu.dimension_semantics<parallel>, #tpu.dimension_semantics<arbitrary>], iteration_bounds = array<i64: 1, 1, 1>, scalar_prefetch = 0 : i64, scratch_operands = 2 : i64, tpu.core_type = #tpu.core_type<tc>, window_params = [{transform_indices = @transform_0, window_bounds = array<i64: 8, 256>}, {transform_indices = @transform_1, window_bounds = array<i64: 8, 256>}, {transform_indices = @transform_2, window_bounds = array<i64: 1, 8, 1>}, {transform_indices = @transform_3, window_bounds = array<i64: 1, 8, 1>}]} {
    %c0_i32 = arith.constant 0 : i32
    %0 = arith.cmpi eq, %arg2, %c0_i32 : i32
    %1 = arith.extui %0 : i1 to i32
    %c0_i32_0 = arith.constant 0 : i32
    %2 = arith.cmpi ne, %1, %c0_i32_0 : i32
    scf.if %2 {
      %cst_15 = arith.constant 0.000000e+00 : f32
      %20 = vector.broadcast %cst_15 : f32 to vector<8x1xf32>
      %c0_16 = arith.constant 0 : index
      %c0_17 = arith.constant 0 : index
      %21 = vector.load %arg7[%c0_16, %c0_17] : memref<8x1xf32, #tpu.memory_space<vmem>>, vector<8x1xf32>
      tpu.vector_store %arg7[%c0_16, %c0_17], %20 {strides = array<i32>} : memref<8x1xf32, #tpu.memory_space<vmem>>, vector<8x1xf32>,
      %cst_18 = arith.constant 0.000000e+00 : f32
      %22 = vector.broadcast %cst_18 : f32 to vector<8x1xf32>
      %c0_19 = arith.constant 0 : index
      %c0_20 = arith.constant 0 : index
      %23 = vector.load %arg8[%c0_19, %c0_20] : memref<8x1xf32, #tpu.memory_space<vmem>>, vector<8x1xf32>
      tpu.vector_store %arg8[%c0_19, %c0_20], %22 {strides = array<i32>} : memref<8x1xf32, #tpu.memory_space<vmem>>, vector<8x1xf32>,
    } else {
    }
    %c0 = arith.constant 0 : index
    %c0_1 = arith.constant 0 : index
    %3 = vector.load %arg3[%c0, %c0_1] : memref<8x256xf32, #tpu.memory_space<vmem>>, vector<8x256xf32>
    %c0_2 = arith.constant 0 : index
    %c0_3 = arith.constant 0 : index
    %4 = vector.load %arg4[%c0_2, %c0_3] : memref<8x256xf32, #tpu.memory_space<vmem>>, vector<8x256xf32>
    %c0_4 = arith.constant 0 : index
    %c0_5 = arith.constant 0 : index
    %5 = vector.load %arg7[%c0_4, %c0_5] : memref<8x1xf32, #tpu.memory_space<vmem>>, vector<8x1xf32>
    %6 = arith.mulf %3, %4 : vector<8x256xf32>
    %cst = arith.constant dense<0.000000e+00> : vector<8xf32>
    %7 = vector.multi_reduction <add>, %6, %cst [1] : vector<8x256xf32> to vector<8xf32>
    %8 = vector.shape_cast %7 : vector<8xf32> to vector<8x1xf32>
    %9 = arith.addf %5, %8 : vector<8x1xf32>
    %c0_6 = arith.constant 0 : index
    %c0_7 = arith.constant 0 : index
    %10 = vector.load %arg7[%c0_6, %c0_7] : memref<8x1xf32, #tpu.memory_space<vmem>>, vector<8x1xf32>
    tpu.vector_store %arg7[%c0_6, %c0_7], %9 {strides = array<i32>} : memref<8x1xf32, #tpu.memory_space<vmem>>, vector<8x1xf32>,
    %c0_8 = arith.constant 0 : index
    %c0_9 = arith.constant 0 : index
    %11 = vector.load %arg8[%c0_8, %c0_9] : memref<8x1xf32, #tpu.memory_space<vmem>>, vector<8x1xf32>
    %12 = arith.addf %3, %4 : vector<8x256xf32>
    %cst_10 = arith.constant dense<0.000000e+00> : vector<8xf32>
    %13 = vector.multi_reduction <add>, %12, %cst_10 [1] : vector<8x256xf32> to vector<8xf32>
    %14 = vector.shape_cast %13 : vector<8xf32> to vector<8x1xf32>
    %15 = arith.addf %11, %14 : vector<8x1xf32>
    %c0_11 = arith.constant 0 : index
    %c0_12 = arith.constant 0 : index
    %16 = vector.load %arg8[%c0_11, %c0_12] : memref<8x1xf32, #tpu.memory_space<vmem>>, vector<8x1xf32>
    tpu.vector_store %arg8[%c0_11, %c0_12], %15 {strides = array<i32>} : memref<8x1xf32, #tpu.memory_space<vmem>>, vector<8x1xf32>,
    %c0_i32_13 = arith.constant 0 : i32
    %17 = arith.cmpi eq, %arg2, %c0_i32_13 : i32
    %18 = arith.extui %17 : i1 to i32
    %c0_i32_14 = arith.constant 0 : i32
    %19 = arith.cmpi ne, %18, %c0_i32_14 : i32
    scf.if %19 {
      %c0_15 = arith.constant 0 : index
      %c0_16 = arith.constant 0 : index
      %20 = vector.load %arg7[%c0_15, %c0_16] : memref<8x1xf32, #tpu.memory_space<vmem>>, vector<8x1xf32>
      %21 = vector.shape_cast %20 : vector<8x1xf32> to vector<1x8x1xf32>
      %c0_17 = arith.constant 0 : index
      %c0_18 = arith.constant 0 : index
      %c0_19 = arith.constant 0 : index
      %22 = vector.load %arg5[%c0_17, %c0_18, %c0_19] : memref<1x8x1xf32, #tpu.memory_space<vmem>>, vector<1x8x1xf32>
      tpu.vector_store %arg5[%c0_17, %c0_18, %c0_19], %21 {strides = array<i32>} : memref<1x8x1xf32, #tpu.memory_space<vmem>>, vector<1x8x1xf32>,
      %c0_20 = arith.constant 0 : index
      %c0_21 = arith.constant 0 : index
      %23 = vector.load %arg8[%c0_20, %c0_21] : memref<8x1xf32, #tpu.memory_space<vmem>>, vector<8x1xf32>
      %24 = vector.shape_cast %23 : vector<8x1xf32> to vector<1x8x1xf32>
      %c0_22 = arith.constant 0 : index
      %c0_23 = arith.constant 0 : index
      %c0_24 = arith.constant 0 : index
      %25 = vector.load %arg6[%c0_22, %c0_23, %c0_24] : memref<1x8x1xf32, #tpu.memory_space<vmem>>, vector<1x8x1xf32>
      tpu.vector_store %arg6[%c0_22, %c0_23, %c0_24], %24 {strides = array<i32>} : memref<1x8x1xf32, #tpu.memory_space<vmem>>, vector<1x8x1xf32>,
    } else {
    }
    return
  }
  func.func @transform_0(%arg0: i32, %arg1: i32, %arg2: i32) -> (i32, i32) {
    %c1_i32 = arith.constant 1 : i32
    %0 = arith.muli %arg1, %c1_i32 : i32
    %1 = arith.addi %0, %arg2 : i32
    %c0_i32 = arith.constant 0 : i32
    return %arg0, %1 : i32, i32
  }
  func.func @transform_1(%arg0: i32, %arg1: i32, %arg2: i32) -> (i32, i32) {
    %c1_i32 = arith.constant 1 : i32
    %0 = arith.muli %arg1, %c1_i32 : i32
    %1 = arith.addi %0, %arg2 : i32
    %c0_i32 = arith.constant 0 : i32
    return %arg0, %1 : i32, i32
  }
  func.func @transform_2(%arg0: i32, %arg1: i32, %arg2: i32) -> (i32, i32, i32) {
    %c0_i32 = arith.constant 0 : i32
    %c0_i32_0 = arith.constant 0 : i32
    return %arg1, %arg0, %c0_i32 : i32, i32, i32
  }
  func.func @transform_3(%arg0: i32, %arg1: i32, %arg2: i32) -> (i32, i32, i32) {
    %c0_i32 = arith.constant 0 : i32
    %c0_i32_0 = arith.constant 0 : i32
    return %arg1, %arg0, %c0_i32 : i32, i32, i32
  }
}

</mosaic_0001>

<llo_original>
// kernel: tpu_custom_call.1
$region0: #{tpu_custom_call.1}
  #allocation0 [shape = 'u32[]', space=smem, size = 0x4, offset = 0x4, fixed_abs, tag = 'smem constant byte address 0x4 - core index']
  #allocation1 [shape = 'u32[72,128]{1,0:T(1,128)}', space=vmem, size = 0x9000, scoped, tag = 'internal scratch']
  #allocation2 [shape = 'f32[8,1]{1,0:T(8,128)}', space=vmem, size = 0x1000, scoped, tag = 'scratch operand']
  #allocation3 [shape = 'f32[8,1]{1,0:T(8,128)}', space=vmem, size = 0x1000, scoped, tag = 'scratch operand']
  %s0 = inlined_call_operand.hbm [shape: f32[8,256], index: 0, kind: input, shape index: {}]
  %s1 = inlined_call_operand.hbm [shape: f32[8,256], index: 1, kind: input, shape index: {}]
  %s2 = inlined_call_operand.vmem [shape: f32[1,8,1], index: 2, kind: output, shape index: {0}]
  %s3 = inlined_call_operand.vmem [shape: f32[1,8,1], index: 3, kind: output, shape index: {1}]
  %4 = xla_tuple %s2, %s3
  %s5 = sld [smem:[#allocation0]]
  $region42: #{tpu_custom_call.1} parent=0
    _
  %s7 = ssub.s32 1, %s5
  %s8 = scalar_select 0, %s7, %s5
  $region1: #{tpu_custom_call.1} parent=0
    #allocation4 [shape = 'u8[8192]{0}', space=vmem, size = 0x2000, scoped, tag = 'input window, operand 0, single buffered']
    #allocation5 [shape = 's32[1]{0}', space=sflag, size = 0x4, scoped, tag = 'scoped memory for tpu_custom_call.1']
    #allocation6 [shape = 'u8[8192]{0}', space=vmem, size = 0x2000, scoped, tag = 'input window, operand 1, single buffered']
    #allocation7 [shape = 's32[1]{0}', space=sflag, size = 0x4, scoped, tag = 'scoped memory for tpu_custom_call.1']
    %9 = vsyncpa [#allocation5], 0
    %10 = vsyncpa [#allocation7], 0
    // Predicated region
    $region2: #{tpu_custom_call.1} parent=1 // pred_check
      _
    $region3: #{tpu_custom_call.1} parent=1 // pred_check_branch
      %12 = sbr.rel (0) target = $region5
    $region4: #{tpu_custom_call.1} parent=1 // pred_region
      %s13 = sadd.s32 0, 0
      %s14 = smul.u32 2, %s13
      %16 = vsyncadd [#allocation5], 0
      %s17 = smul.addr %s14, 8
      %s18 = scalar_lea.hbm %s0, %s17
      %s20 = sshll.u32 %s18, 4
      %s21 = int_to_ptr.hbm [resolvable:$true] %s20
      %s22 = sshll.u32 [#allocation4], 4
      %s23 = int_to_ptr.vmem [resolvable:$true] %s22
      %25 = dma.hbm_to_vmem [thread:$0]  %s21, 256, %s23, [#allocation5]
    $region5: #{tpu_custom_call.1} parent=1 // pred_fallthru
      _
    // Predicated region
    $region6: #{tpu_custom_call.1} parent=1 // pred_check
      _
    $region7: #{tpu_custom_call.1} parent=1 // pred_check_branch
      %27 = sbr.rel (0) target = $region9
    $region8: #{tpu_custom_call.1} parent=1 // pred_region
      %s28 = sadd.s32 0, 0
      %s29 = smul.u32 2, %s28
      %31 = vsyncadd [#allocation7], 0
      %s32 = smul.addr %s29, 8
      %s33 = scalar_lea.hbm %s1, %s32
      %s35 = sshll.u32 %s33, 4
      %s36 = int_to_ptr.hbm [resolvable:$true] %s35
      %s37 = sshll.u32 [#allocation6], 4
      %s38 = int_to_ptr.vmem [resolvable:$true] %s37
      %40 = dma.hbm_to_vmem [thread:$0]  %s36, 256, %s38, [#allocation7]
    $region9: #{tpu_custom_call.1} parent=1 // pred_fallthru
      _
    // Predicated region
    $region10: #{tpu_custom_call.1} parent=1 // pred_check
      _
    $region11: #{tpu_custom_call.1} parent=1 // pred_check_branch
      %42 = sbr.rel (0) target = $region13
    $region12: #{tpu_custom_call.1} parent=1 // pred_region
      %44 = dma.done [#allocation5], 256
    $region13: #{tpu_custom_call.1} parent=1 // pred_fallthru
      _
    // Predicated region
    $region14: #{tpu_custom_call.1} parent=1 // pred_check
      _
    $region15: #{tpu_custom_call.1} parent=1 // pred_check_branch
      %46 = sbr.rel (0) target = $region17
    $region16: #{tpu_custom_call.1} parent=1 // pred_region
      %48 = dma.done [#allocation7], 256
    $region17: #{tpu_custom_call.1} parent=1 // pred_fallthru
      _
    %s49 = sadd.s32 0, 0
    %s50 = smul.u32 2, %s49
    %s51 = sadd.s32 0, 0
    %s52 = smul.u32 2, %s51
    %p53 = scmp.eq.s32.totalorder 0, 0
    // Predicated region
    $region18: #{tpu_custom_call.1} parent=1 // pred_check
      %p54 = pneg %p53
    $region19: #{tpu_custom_call.1} parent=1 // pred_check_branch
      %56 = sbr.rel (%p54) target = $region21
    $region20: #{tpu_custom_call.1} parent=1 // pred_region
      %vm57 = vcmask 7168
      %58 = vst.msk [vmem:[#allocation2] sm:$0xff] %vm57, 0.0
      %59 = vst.msk [vmem:[#allocation3] sm:$0xff] %vm57, 0.0
    $region21: #{tpu_custom_call.1} parent=1 // pred_fallthru
      _
    %v60 = vld [vmem:[#allocation4] sm:$0xff]
    %v61 = vld [vmem:[#allocation4 + $0x8] sm:$0xff]
    %v62 = vld [vmem:[#allocation6] sm:$0xff]
    %v63 = vld [vmem:[#allocation6 + $0x8] sm:$0xff]
    %v64 = vld [vmem:[#allocation2] sm:$0xff]
    %v65 = vmul.f32 %v60, %v62
    %v66 = vmul.f32 %v61, %v63
    %v67 = vadd.f32 %v65, %v66
    %68 = vadd.xlane.f32.xlu0 %v67
    %v69 = vpop.xlane.xlu0 %68
    %v70 = vadd.f32 %v64, %v69
    %vm71 = vcmask 7168
    %72 = vst.msk [vmem:[#allocation2] sm:$0xff] %vm71, %v70
    %v73 = vld [vmem:[#allocation3] sm:$0xff]
    %v74 = vadd.f32 %v60, %v62
    %v75 = vadd.f32 %v61, %v63
    %v76 = vadd.f32 %v74, %v75
    %77 = vadd.xlane.f32.xlu0 %v76
    %v78 = vpop.xlane.xlu0 %77
    %v79 = vadd.f32 %v73, %v78
    %80 = vst.msk [vmem:[#allocation3] sm:$0xff] %vm71, %v79
    // Predicated region
    $region22: #{tpu_custom_call.1} parent=1 // pred_check
      %p81 = pneg %p53
    $region23: #{tpu_custom_call.1} parent=1 // pred_check_branch
      %83 = sbr.rel (%p81) target = $region25
    $region24: #{tpu_custom_call.1} parent=1 // pred_region
      %v84 = vld [vmem:[#allocation2] sm:$0xff]
      %85 = vst.msk [vmem:[%s2] sm:$0xff] %vm71, %v84
      %v86 = vld [vmem:[#allocation3] sm:$0xff]
      %87 = vst.msk [vmem:[%s3] sm:$0xff] %vm71, %v86
    $region25: #{tpu_custom_call.1} parent=1 // pred_fallthru
      _
    // Predicated region
    $region26: #{tpu_custom_call.1} parent=1 // pred_check
      _
    $region27: #{tpu_custom_call.1} parent=1 // pred_check_branch
      %89 = sbr.rel (0) target = $region29
    $region28: #{tpu_custom_call.1} parent=1 // pred_region
      _
    $region29: #{tpu_custom_call.1} parent=1 // pred_fallthru
      _
    // Predicated region
    $region30: #{tpu_custom_call.1} parent=1 // pred_check
      _
    $region31: #{tpu_custom_call.1} parent=1 // pred_check_branch
      %91 = sbr.rel (0) target = $region33
    $region32: #{tpu_custom_call.1} parent=1 // pred_region
      _
    $region33: #{tpu_custom_call.1} parent=1 // pred_fallthru
      _
    // Predicated region
    $region34: #{tpu_custom_call.1} parent=1 // pred_check
      _
    $region35: #{tpu_custom_call.1} parent=1 // pred_check_branch
      %93 = sbr.rel (0) target = $region37
    $region36: #{tpu_custom_call.1} parent=1 // pred_region
      _
    $region37: #{tpu_custom_call.1} parent=1 // pred_fallthru
      _
    // Predicated region
    $region38: #{tpu_custom_call.1} parent=1 // pred_check
      _
    $region39: #{tpu_custom_call.1} parent=1 // pred_check_branch
      %95 = sbr.rel (0) target = $region41
    $region40: #{tpu_custom_call.1} parent=1 // pred_region
      _
    $region41: #{tpu_custom_call.1} parent=1 // pred_fallthru
      _
    %96 = vsyncpa [#allocation5], 1
    %97 = vsyncpa [#allocation7], 1

</llo_original>
